<compile_context>
chip_gen: v5e
topology: v5e:2x2
jax: 0.10.0
libtpu: 0.0.40
codegen_flags: <defaults>
</compile_context>

<pallas_src>
import math

import jax
import jax.numpy as jnp
from jax.experimental import pallas as pl
from jax.experimental.pallas import tpu as pltpu

N_HEADS = 2
# Set False for exact division in the softmax (e.g. if this layer feeds a logit head).
APPROX_SOFTMAX_RECIP = True


def _round_up(x, m):
    return ((x + m - 1) // m) * m


def _mha_kernel(dec_ref, mem_ref, mask_ref,
                wq_ref, bq_ref, wk_ref, bk_ref, wv_ref, bv_ref,
                wo_ref, bo_ref, out_ref):
    # dec_ref : (Bc, Lq, Dq) f32   decoder hidden states (query side) chunk
    # mem_ref : (Bc, Lm, E)  f32   knowledge / memory embeddings chunk
    # mask_ref: (Bc, 1, Lm)  f32   1.0 = attend, 0.0 = masked
    # wq_ref  : (Dq, E) bf16       1/sqrt(head_dim) pre-folded
    # wk/wv   : (E, E)  bf16
    # wo_ref  : (E, Ep) bf16       column-padded to Ep = roundup(E, 128) with zeros
    # bq/bk/bv: (1, E)  f32 ; bo_ref: (1, Ep) f32
    # out_ref : (Bc, Lq, Ep) f32   lane-dense (Ep % 128 == 0) store
    Bc, Lq, Dq = dec_ref.shape
    _, Lm, E = mem_ref.shape
    hd = E // N_HEADS

    # --- projections: full-width 2-D GEMMs, bf16 operands, f32 accumulate -------
    # Lq and Lm are padded to multiples of 8 by the wrapper, so these reshapes do
    # not materialize VMEM copies.
    dec2d = dec_ref[...].reshape(Bc * Lq, Dq).astype(jnp.bfloat16)
    mem2d = mem_ref[...].reshape(Bc * Lm, E).astype(jnp.bfloat16)

    q = jnp.dot(dec2d, wq_ref[...], preferred_element_type=jnp.float32) + bq_ref[...]
    k = jnp.dot(mem2d, wk_ref[...], preferred_element_type=jnp.float32) + bk_ref[...]
    v = jnp.dot(mem2d, wv_ref[...], preferred_element_type=jnp.float32) + bv_ref[...]

    q3 = q.reshape(Bc, Lq, E).astype(jnp.bfloat16)
    k3 = k.reshape(Bc, Lm, E).astype(jnp.bfloat16)
    v3 = v.reshape(Bc, Lm, E).astype(jnp.bfloat16)

    # additive mask, hoisted out of the head loop (mask==1 -> 0.0, mask==0 -> -1e10)
    add_mask = (mask_ref[...] - 1.0) * jnp.float32(1e10)            # (Bc, 1, Lm)

    # --- per-head attention (static unroll, N_HEADS == 2) -----------------------
    # When E >= 128 these head slices land on vreg boundaries and are free; at the
    # toy E=32 they are cheap in-vreg lane selects (multi-batch-dim dot_general is
    # deliberately not relied upon for Mosaic lowering).
    head_outs = []
    for h in range(N_HEADS):
        sl = slice(h * hd, (h + 1) * hd)
        qh = q3[:, :, sl]                                           # (Bc, Lq, hd)
        kh = k3[:, :, sl]                                           # (Bc, Lm, hd)
        vh = v3[:, :, sl]                                           # (Bc, Lm, hd)

        # scale already folded into Wq/bq; batched matmul via einsum (no explicit .T)
        energy = jnp.einsum("bqd,bkd->bqk", qh, kh,
                            preferred_element_type=jnp.float32) + add_mask

        # numerically stable softmax along the memory axis (f32 math)
        m = jnp.max(energy, axis=-1, keepdims=True)
        e = jnp.exp(energy - m)
        denom = jnp.sum(e, axis=-1, keepdims=True)
        if APPROX_SOFTMAX_RECIP:
            attn = e * pl.reciprocal(denom, approx=True)            # EUP slot, ~free
        else:
            attn = e / denom

        oh = jnp.einsum("bqk,bkd->bqd", attn.astype(jnp.bfloat16), vh,
                        preferred_element_type=jnp.float32)          # (Bc, Lq, hd)
        head_outs.append(oh)

    # Head "concat" is an in-vreg lane write when E <= 128 (and a free layout op
    # when hd % 128 == 0). A single K=E output GEMM beats N_HEADS GEMMs whose
    # K=hd contraction each pad up to the 128-deep MXU tile.
    x = jnp.concatenate(head_outs, axis=-1)                          # (Bc, Lq, E)
    x2d = x.reshape(Bc * Lq, E).astype(jnp.bfloat16)

    out = jnp.dot(x2d, wo_ref[...], preferred_element_type=jnp.float32) + bo_ref[...]
    out_ref[...] = out.reshape(Bc, Lq, out_ref.shape[-1]).astype(out_ref.dtype)


def _pick_batch_chunk(B, Lq_p, Lm_p, Dq, E, Ep):
    """Batch elements per grid step.

    * targets ~512 flattened GEMM rows per step (multiple of 128 for the v5e MXU,
      of 256 for v6e/v7x, and big enough to amortize the ~0.35us/step pipeline cost)
    * capped by a VMEM budget (activation blocks are double-buffered by the
      pipeline) sized to fit v7x's 64 MiB part with headroom
    * keeps >= 2 grid steps on large batches so ("parallel",) semantics can shard
      across v7x's two TensorCores.
    The caller pads B UP to a multiple of the returned chunk (never shrinks the
    chunk to a divisor of B, which would collapse to bc=1 for prime/odd batches).
    """
    target_rows = 512
    bc = max(1, target_rows // max(Lq_p, 1))
    budget = 16 * 1024 * 1024  # double-buffered activation bytes kept well under VMEM
    act_bytes = lambda c: 2 * 4 * c * (Lq_p * Dq + Lm_p * E + Lm_p + Lq_p * Ep)
    while bc > 1 and act_bytes(bc) > budget:
        bc //= 2
    if B * Lq_p >= 2 * target_rows:      # enough work for two compute-heavy chunks
        bc = min(bc, (B + 1) // 2)
    return max(1, min(bc, B))


def knowledge_v3_forward(dec_hidden, knowledge, mem_mask, params):
    """dec_hidden: (B, Lq, Dq); knowledge: (B, Lm, E); mem_mask: (B, Lm) {0,1}."""
    B, Lq, Dq = dec_hidden.shape
    Bk, Lm, E = knowledge.shape
    assert Bk == B and E % N_HEADS == 0
    hd = E // N_HEADS
    inv_scale = 1.0 / math.sqrt(hd)

    Ep = _round_up(E, 128)      # lane-dense output store width
    Lq_p = _round_up(Lq, 8)     # sublane-aligned in-kernel reshapes
    Lm_p = _round_up(Lm, 8)

    bc = _pick_batch_chunk(B, Lq_p, Lm_p, Dq, E, Ep)
    n_steps = -(-B // bc)
    B_pad = n_steps * bc

    # --- weights: fold 1/sqrt(hd) into Wq/bq; bf16 MXU operands, f32 biases ------
    wq = (params["wq"] * inv_scale).astype(jnp.bfloat16)
    bq = (params["bq"] * inv_scale).astype(jnp.float32)
    wk = params["wk"].astype(jnp.bfloat16)
    bk = params["bk"].astype(jnp.float32)
    wv = params["wv"].astype(jnp.bfloat16)
    bv = params["bv"].astype(jnp.float32)
    # output projection column-padded to Ep (zeros) -> kernel stores are 128-lane dense
    wo = jnp.zeros((E, Ep), jnp.bfloat16).at[:, :E].set(params["wo"].astype(jnp.bfloat16))
    bo = jnp.zeros((1, Ep), jnp.float32).at[:, :E].set(params["bo"].astype(jnp.float32))

    # --- pad activations (batch to chunk multiple, seq dims to multiples of 8) ---
    dec_p = jnp.zeros((B_pad, Lq_p, Dq), jnp.float32).at[:B, :Lq, :].set(
        dec_hidden.astype(jnp.float32))
    mem_p = jnp.zeros((B_pad, Lm_p, E), jnp.float32).at[:B, :Lm, :].set(
        knowledge.astype(jnp.float32))
    mask_p = jnp.zeros((B_pad, 1, Lm_p), jnp.float32).at[:B, 0, :Lm].set(
        mem_mask.astype(jnp.float32))            # padded keys stay masked (0)

    const2d = lambda shape: pl.BlockSpec(shape, lambda b: (0, 0))

    flops = 2 * B_pad * (Lq_p * Dq * E + 2 * Lm_p * E * E
                         + 2 * N_HEADS * Lq_p * Lm_p * hd + Lq_p * E * Ep)
    transcendentals = B_pad * N_HEADS * Lq_p * Lm_p
    bytes_accessed = (4 * B_pad * (Lq_p * Dq + Lm_p * E + Lm_p + Lq_p * Ep)
                      + 2 * (Dq * E + 2 * E * E + E * Ep) + 4 * (3 * E + Ep))

    out_p = pl.pallas_call(
        _mha_kernel,
        out_shape=jax.ShapeDtypeStruct((B_pad, Lq_p, Ep), jnp.float32),
        grid_spec=pltpu.PrefetchScalarGridSpec(
            num_scalar_prefetch=0,
            grid=(n_steps,),
            in_specs=[
                pl.BlockSpec((bc, Lq_p, Dq), lambda b: (b, 0, 0)),   # dec chunk
                pl.BlockSpec((bc, Lm_p, E), lambda b: (b, 0, 0)),    # knowledge chunk
                pl.BlockSpec((bc, 1, Lm_p), lambda b: (b, 0, 0)),    # mask chunk
                const2d((Dq, E)), const2d((1, E)),                   # Wq', bq'
                const2d((E, E)), const2d((1, E)),                    # Wk, bk
                const2d((E, E)), const2d((1, E)),                    # Wv, bv
                const2d((E, Ep)), const2d((1, Ep)),                  # Wo (padded), bo
            ],
            out_specs=pl.BlockSpec((bc, Lq_p, Ep), lambda b: (b, 0, 0)),
        ),
        compiler_params=pltpu.CompilerParams(
            dimension_semantics=("parallel",),
            vmem_limit_bytes=48 * 1024 * 1024,    # safe on v7x (64 MiB physical) too
        ),
        cost_estimate=pl.CostEstimate(
            flops=int(flops),
            transcendentals=int(transcendentals),
            bytes_accessed=int(bytes_accessed)),
    )(dec_p, mem_p, mask_p, wq, bq, wk, bk, wv, bv, wo, bo)

    return out_p[:B, :Lq, :E]


def _reference_forward(dec_hidden, knowledge, mem_mask, params):
    """Plain-JAX f32 reference (mirrors the PyTorch MultiHeadAttentionLayer, eval)."""
    B, Lq, Dq = dec_hidden.shape
    _, Lm, E = knowledge.shape
    hd = E // N_HEADS
    q = dec_hidden @ params["wq"] + params["bq"]
    k = knowledge @ params["wk"] + params["bk"]
    v = knowledge @ params["wv"] + params["bv"]
    q = q.reshape(B, Lq, N_HEADS, hd).transpose(0, 2, 1, 3)
    k = k.reshape(B, Lm, N_HEADS, hd).transpose(0, 2, 1, 3)
    v = v.reshape(B, Lm, N_HEADS, hd).transpose(0, 2, 1, 3)
    energy = jnp.einsum("bhqd,bhkd->bhqk", q, k) / jnp.sqrt(jnp.float32(hd))
    energy = jnp.where(mem_mask[:, None, None, :] == 0.0, -1e10, energy)
    attn = jax.nn.softmax(energy, axis=-1)
    x = jnp.einsum("bhqk,bhkd->bhqd", attn, v)
    x = x.transpose(0, 2, 1, 3).reshape(B, Lq, E)
    return x @ params["wo"] + params["bo"]


def init_params(key, dec_hid_size, embed_size):
    """Deterministic PyTorch-Linear-style init (uniform +/- 1/sqrt(fan_in))."""
    ks = jax.random.split(key, 8)

    def lin(kw, kb, fan_in, fan_out):
        bound = 1.0 / (fan_in ** 0.5)
        w = jax.random.uniform(kw, (fan_in, fan_out), jnp.float32, -bound, bound)
        b = jax.random.uniform(kb, (1, fan_out), jnp.float32, -bound, bound)
        return w, b

    wq, bq = lin(ks[0], ks[1], dec_hid_size, embed_size)
    wk, bk = lin(ks[2], ks[3], embed_size, embed_size)
    wv, bv = lin(ks[4], ks[5], embed_size, embed_size)
    wo, bo = lin(ks[6], ks[7], embed_size, embed_size)
    return dict(wq=wq, bq=bq, wk=wk, bk=bk, wv=wv, bv=bv, wo=wo, bo=bo)


if __name__ == "__main__":
    # Small shapes: batch=2, query len=8, memory len=16, dec_hid=32, embed=32, heads=2.
    B, Lq, Lm, DEC_HID, EMBED = 2, 8, 16, 32, 32

    root = jax.random.PRNGKey(0)
    k_param, k_dec, k_mem, k_mask = jax.random.split(root, 4)

    params = init_params(k_param, DEC_HID, EMBED)
    dec_hidden = jax.random.normal(k_dec, (B, Lq, DEC_HID), jnp.float32)
    knowledge = jax.random.normal(k_mem, (B, Lm, EMBED), jnp.float32)  # init_knowledge(mem_embeddings)
    # binary memory mask (1 = attend, 0 = masked); keep at least the first slot valid
    mem_mask = (jax.random.uniform(k_mask, (B, Lm)) > 0.3).astype(jnp.float32)
    mem_mask = mem_mask.at[:, 0].set(1.0)

    out = knowledge_v3_forward(dec_hidden, knowledge, mem_mask, params)
    out = jax.block_until_ready(out)

    ref = _reference_forward(dec_hidden, knowledge, mem_mask, params)
    assert out.shape == (B, Lq, EMBED)
    # bf16 MXU operands + approx softmax reciprocal vs the pure-f32 reference:
    # end-to-end deviation is ~1e-2 level; 5e-2 tolerance verifies the semantics.
    assert jnp.allclose(out, ref, atol=5e-2, rtol=5e-2), "mismatch vs reference"

    print("KERNEL_OK")
</pallas_src>

<mosaic_0001>
module attributes {stable_mosaic.version = 11 : i64} {
  func.func @_mha_kernel(%arg0: i32, %arg1: memref<2x8x32xf32, #tpu.memory_space<vmem>>, %arg2: memref<2x16x32xf32, #tpu.memory_space<vmem>>, %arg3: memref<2x1x16xf32, #tpu.memory_space<vmem>>, %arg4: memref<32x32xbf16, #tpu.memory_space<vmem>>, %arg5: memref<1x32xf32, #tpu.memory_space<vmem>>, %arg6: memref<32x32xbf16, #tpu.memory_space<vmem>>, %arg7: memref<1x32xf32, #tpu.memory_space<vmem>>, %arg8: memref<32x32xbf16, #tpu.memory_space<vmem>>, %arg9: memref<1x32xf32, #tpu.memory_space<vmem>>, %arg10: memref<32x128xbf16, #tpu.memory_space<vmem>>, %arg11: memref<1x128xf32, #tpu.memory_space<vmem>>, %arg12: memref<2x8x128xf32, #tpu.memory_space<vmem>>) attributes {dimension_semantics = [#tpu.dimension_semantics<parallel>], iteration_bounds = array<i64: 1>, scalar_prefetch = 0 : i64, scratch_operands = 0 : i64, tpu.core_type = #tpu.core_type<tc>, window_params = [{transform_indices = @transform_0, window_bounds = array<i64: 2, 8, 32>}, {transform_indices = @transform_1, window_bounds = array<i64: 2, 16, 32>}, {transform_indices = @transform_2, window_bounds = array<i64: 2, 1, 16>}, {pipeline_mode = #tpu.pipeline_mode<synchronous>, transform_indices = @transform_3, window_bounds = array<i64: 32, 32>}, {pipeline_mode = #tpu.pipeline_mode<synchronous>, transform_indices = @transform_4, window_bounds = array<i64: 1, 32>}, {pipeline_mode = #tpu.pipeline_mode<synchronous>, transform_indices = @transform_5, window_bounds = array<i64: 32, 32>}, {pipeline_mode = #tpu.pipeline_mode<synchronous>, transform_indices = @transform_6, window_bounds = array<i64: 1, 32>}, {pipeline_mode = #tpu.pipeline_mode<synchronous>, transform_indices = @transform_7, window_bounds = array<i64: 32, 32>}, {pipeline_mode = #tpu.pipeline_mode<synchronous>, transform_indices = @transform_8, window_bounds = array<i64: 1, 32>}, {pipeline_mode = #tpu.pipeline_mode<synchronous>, transform_indices = @transform_9, window_bounds = array<i64: 32, 128>}, {pipeline_mode = #tpu.pipeline_mode<synchronous>, transform_indices = @transform_10, window_bounds = array<i64: 1, 128>}, {transform_indices = @transform_11, window_bounds = array<i64: 2, 8, 128>}]} {
    %c0 = arith.constant 0 : index
    %c0_0 = arith.constant 0 : index
    %c0_1 = arith.constant 0 : index
    %0 = vector.load %arg1[%c0, %c0_0, %c0_1] : memref<2x8x32xf32, #tpu.memory_space<vmem>>, vector<2x8x32xf32>
    %1 = vector.shape_cast %0 : vector<2x8x32xf32> to vector<16x32xf32>
    %2 = arith.truncf %1 : vector<16x32xf32> to vector<16x32xbf16>
    %c0_2 = arith.constant 0 : index
    %c0_3 = arith.constant 0 : index
    %c0_4 = arith.constant 0 : index
    %3 = vector.load %arg2[%c0_2, %c0_3, %c0_4] : memref<2x16x32xf32, #tpu.memory_space<vmem>>, vector<2x16x32xf32>
    %4 = vector.shape_cast %3 : vector<2x16x32xf32> to vector<32x32xf32>
    %5 = arith.truncf %4 : vector<32x32xf32> to vector<32x32xbf16>
    %c0_5 = arith.constant 0 : index
    %c0_6 = arith.constant 0 : index
    %6 = vector.load %arg4[%c0_5, %c0_6] : memref<32x32xbf16, #tpu.memory_space<vmem>>, vector<32x32xbf16>
    %cst = arith.constant dense<0.000000e+00> : vector<16x32xf32>
    %7 = tpu.matmul %2, %6, %cst {dimension_numbers = #tpu.dot_dimension_numbers<[1], [0], [0], [1], [0, 0, 1, 1], [], []>} : vector<16x32xbf16>, vector<32x32xbf16>, vector<16x32xf32> -> vector<16x32xf32>
    %c0_7 = arith.constant 0 : index
    %c0_8 = arith.constant 0 : index
    %8 = vector.load %arg5[%c0_7, %c0_8] : memref<1x32xf32, #tpu.memory_space<vmem>>, vector<1x32xf32>
    %9 = vector.broadcast %8 : vector<1x32xf32> to vector<16x32xf32>
    %10 = arith.addf %7, %9 : vector<16x32xf32>
    %c0_9 = arith.constant 0 : index
    %c0_10 = arith.constant 0 : index
    %11 = vector.load %arg6[%c0_9, %c0_10] : memref<32x32xbf16, #tpu.memory_space<vmem>>, vector<32x32xbf16>
    %cst_11 = arith.constant dense<0.000000e+00> : vector<32x32xf32>
    %12 = tpu.matmul %5, %11, %cst_11 {dimension_numbers = #tpu.dot_dimension_numbers<[1], [0], [0], [1], [0, 0, 1, 1], [], []>} : vector<32x32xbf16>, vector<32x32xbf16>, vector<32x32xf32> -> vector<32x32xf32>
    %c0_12 = arith.constant 0 : index
    %c0_13 = arith.constant 0 : index
    %13 = vector.load %arg7[%c0_12, %c0_13] : memref<1x32xf32, #tpu.memory_space<vmem>>, vector<1x32xf32>
    %14 = vector.broadcast %13 : vector<1x32xf32> to vector<32x32xf32>
    %15 = arith.addf %12, %14 : vector<32x32xf32>
    %c0_14 = arith.constant 0 : index
    %c0_15 = arith.constant 0 : index
    %16 = vector.load %arg8[%c0_14, %c0_15] : memref<32x32xbf16, #tpu.memory_space<vmem>>, vector<32x32xbf16>
    %cst_16 = arith.constant dense<0.000000e+00> : vector<32x32xf32>
    %17 = tpu.matmul %5, %16, %cst_16 {dimension_numbers = #tpu.dot_dimension_numbers<[1], [0], [0], [1], [0, 0, 1, 1], [], []>} : vector<32x32xbf16>, vector<32x32xbf16>, vector<32x32xf32> -> vector<32x32xf32>
    %c0_17 = arith.constant 0 : index
    %c0_18 = arith.constant 0 : index
    %18 = vector.load %arg9[%c0_17, %c0_18] : memref<1x32xf32, #tpu.memory_space<vmem>>, vector<1x32xf32>
    %19 = vector.broadcast %18 : vector<1x32xf32> to vector<32x32xf32>
    %20 = arith.addf %17, %19 : vector<32x32xf32>
    %21 = vector.shape_cast %10 : vector<16x32xf32> to vector<2x8x32xf32>
    %22 = arith.truncf %21 : vector<2x8x32xf32> to vector<2x8x32xbf16>
    %23 = vector.shape_cast %15 : vector<32x32xf32> to vector<2x16x32xf32>
    %24 = arith.truncf %23 : vector<2x16x32xf32> to vector<2x16x32xbf16>
    %25 = vector.shape_cast %20 : vector<32x32xf32> to vector<2x16x32xf32>
    %26 = arith.truncf %25 : vector<2x16x32xf32> to vector<2x16x32xbf16>
    %c0_19 = arith.constant 0 : index
    %c0_20 = arith.constant 0 : index
    %c0_21 = arith.constant 0 : index
    %27 = vector.load %arg3[%c0_19, %c0_20, %c0_21] : memref<2x1x16xf32, #tpu.memory_space<vmem>>, vector<2x1x16xf32>
    %cst_22 = arith.constant 1.000000e+00 : f32
    %28 = vector.broadcast %cst_22 : f32 to vector<2x1x16xf32>
    %29 = arith.subf %27, %28 : vector<2x1x16xf32>
    %cst_23 = arith.constant 1.000000e+10 : f32
    %30 = vector.broadcast %cst_23 : f32 to vector<2x1x16xf32>
    %31 = arith.mulf %29, %30 : vector<2x1x16xf32>
    %32 = vector.extract_strided_slice %22 {offsets = [0, 0, 0], sizes = [2, 8, 16], strides = [1, 1, 1]} : vector<2x8x32xbf16> to vector<2x8x16xbf16>
    %33 = vector.extract_strided_slice %24 {offsets = [0, 0, 0], sizes = [2, 16, 16], strides = [1, 1, 1]} : vector<2x16x32xbf16> to vector<2x16x16xbf16>
    %34 = vector.extract_strided_slice %26 {offsets = [0, 0, 0], sizes = [2, 16, 16], strides = [1, 1, 1]} : vector<2x16x32xbf16> to vector<2x16x16xbf16>
    "tpu.trace_start"() <{level = 10 : i32, message = "bqd,bkd->bqk"}> : () -> ()
    %cst_24 = arith.constant dense<0.000000e+00> : vector<2x8x16xf32>
    %35 = tpu.matmul %32, %33, %cst_24 {dimension_numbers = #tpu.dot_dimension_numbers<[2], [2], [1], [1], [0, 0, 0, 1, 1, 1], [0], [0]>} : vector<2x8x16xbf16>, vector<2x16x16xbf16>, vector<2x8x16xf32> -> vector<2x8x16xf32>
    "tpu.trace_stop"() : () -> ()
    %36 = vector.broadcast %31 : vector<2x1x16xf32> to vector<2x8x16xf32>
    %37 = arith.addf %35, %36 : vector<2x8x16xf32>
    %cst_25 = arith.constant dense<0xFF800000> : vector<2x8xf32>
    %38 = vector.multi_reduction <maximumf>, %37, %cst_25 [2] : vector<2x8x16xf32> to vector<2x8xf32>
    %39 = vector.shape_cast %38 : vector<2x8xf32> to vector<2x8x1xf32>
    %40 = vector.broadcast %39 : vector<2x8x1xf32> to vector<2x8x16xf32>
    %41 = arith.subf %37, %40 : vector<2x8x16xf32>
    %42 = math.exp %41 : vector<2x8x16xf32>
    %cst_26 = arith.constant dense<0.000000e+00> : vector<2x8xf32>
    %43 = vector.multi_reduction <add>, %42, %cst_26 [2] : vector<2x8x16xf32> to vector<2x8xf32>
    %44 = vector.shape_cast %43 : vector<2x8xf32> to vector<2x8x1xf32>
    %45 = tpu.reciprocal %44 {approx = true} : vector<2x8x1xf32> -> vector<2x8x1xf32>
    %46 = vector.broadcast %45 : vector<2x8x1xf32> to vector<2x8x16xf32>
    %47 = arith.mulf %42, %46 : vector<2x8x16xf32>
    %48 = arith.truncf %47 : vector<2x8x16xf32> to vector<2x8x16xbf16>
    "tpu.trace_start"() <{level = 10 : i32, message = "bqk,bkd->bqd"}> : () -> ()
    %cst_27 = arith.constant dense<0.000000e+00> : vector<2x8x16xf32>
    %49 = tpu.matmul %48, %34, %cst_27 {dimension_numbers = #tpu.dot_dimension_numbers<[2], [1], [1], [2], [0, 0, 0, 1, 1, 2], [0], [0]>} : vector<2x8x16xbf16>, vector<2x16x16xbf16>, vector<2x8x16xf32> -> vector<2x8x16xf32>
    "tpu.trace_stop"() : () -> ()
    %50 = vector.extract_strided_slice %22 {offsets = [0, 0, 16], sizes = [2, 8, 16], strides = [1, 1, 1]} : vector<2x8x32xbf16> to vector<2x8x16xbf16>
    %51 = vector.extract_strided_slice %24 {offsets = [0, 0, 16], sizes = [2, 16, 16], strides = [1, 1, 1]} : vector<2x16x32xbf16> to vector<2x16x16xbf16>
    %52 = vector.extract_strided_slice %26 {offsets = [0, 0, 16], sizes = [2, 16, 16], strides = [1, 1, 1]} : vector<2x16x32xbf16> to vector<2x16x16xbf16>
    "tpu.trace_start"() <{level = 10 : i32, message = "bqd,bkd->bqk"}> : () -> ()
    %cst_28 = arith.constant dense<0.000000e+00> : vector<2x8x16xf32>
    %53 = tpu.matmul %50, %51, %cst_28 {dimension_numbers = #tpu.dot_dimension_numbers<[2], [2], [1], [1], [0, 0, 0, 1, 1, 1], [0], [0]>} : vector<2x8x16xbf16>, vector<2x16x16xbf16>, vector<2x8x16xf32> -> vector<2x8x16xf32>
    "tpu.trace_stop"() : () -> ()
    %54 = vector.broadcast %31 : vector<2x1x16xf32> to vector<2x8x16xf32>
    %55 = arith.addf %53, %54 : vector<2x8x16xf32>
    %cst_29 = arith.constant dense<0xFF800000> : vector<2x8xf32>
    %56 = vector.multi_reduction <maximumf>, %55, %cst_29 [2] : vector<2x8x16xf32> to vector<2x8xf32>
    %57 = vector.shape_cast %56 : vector<2x8xf32> to vector<2x8x1xf32>
    %58 = vector.broadcast %57 : vector<2x8x1xf32> to vector<2x8x16xf32>
    %59 = arith.subf %55, %58 : vector<2x8x16xf32>
    %60 = math.exp %59 : vector<2x8x16xf32>
    %cst_30 = arith.constant dense<0.000000e+00> : vector<2x8xf32>
    %61 = vector.multi_reduction <add>, %60, %cst_30 [2] : vector<2x8x16xf32> to vector<2x8xf32>
    %62 = vector.shape_cast %61 : vector<2x8xf32> to vector<2x8x1xf32>
    %63 = tpu.reciprocal %62 {approx = true} : vector<2x8x1xf32> -> vector<2x8x1xf32>
    %64 = vector.broadcast %63 : vector<2x8x1xf32> to vector<2x8x16xf32>
    %65 = arith.mulf %60, %64 : vector<2x8x16xf32>
    %66 = arith.truncf %65 : vector<2x8x16xf32> to vector<2x8x16xbf16>
    "tpu.trace_start"() <{level = 10 : i32, message = "bqk,bkd->bqd"}> : () -> ()
    %cst_31 = arith.constant dense<0.000000e+00> : vector<2x8x16xf32>
    %67 = tpu.matmul %66, %52, %cst_31 {dimension_numbers = #tpu.dot_dimension_numbers<[2], [1], [1], [2], [0, 0, 0, 1, 1, 2], [0], [0]>} : vector<2x8x16xbf16>, vector<2x16x16xbf16>, vector<2x8x16xf32> -> vector<2x8x16xf32>
    "tpu.trace_stop"() : () -> ()
    %68 = tpu.concatenate %49, %67 in 2 : vector<2x8x16xf32>, vector<2x8x16xf32> -> vector<2x8x32xf32>
    %69 = vector.shape_cast %68 : vector<2x8x32xf32> to vector<16x32xf32>
    %70 = arith.truncf %69 : vector<16x32xf32> to vector<16x32xbf16>
    %c0_32 = arith.constant 0 : index
    %c0_33 = arith.constant 0 : index
    %71 = vector.load %arg10[%c0_32, %c0_33] : memref<32x128xbf16, #tpu.memory_space<vmem>>, vector<32x128xbf16>
    %cst_34 = arith.constant dense<0.000000e+00> : vector<16x128xf32>
    %72 = tpu.matmul %70, %71, %cst_34 {dimension_numbers = #tpu.dot_dimension_numbers<[1], [0], [0], [1], [0, 0, 1, 1], [], []>} : vector<16x32xbf16>, vector<32x128xbf16>, vector<16x128xf32> -> vector<16x128xf32>
    %c0_35 = arith.constant 0 : index
    %c0_36 = arith.constant 0 : index
    %73 = vector.load %arg11[%c0_35, %c0_36] : memref<1x128xf32, #tpu.memory_space<vmem>>, vector<1x128xf32>
    %74 = vector.broadcast %73 : vector<1x128xf32> to vector<16x128xf32>
    %75 = arith.addf %72, %74 : vector<16x128xf32>
    %76 = vector.shape_cast %75 : vector<16x128xf32> to vector<2x8x128xf32>
    %c0_37 = arith.constant 0 : index
    %c0_38 = arith.constant 0 : index
    %c0_39 = arith.constant 0 : index
    %77 = vector.load %arg12[%c0_37, %c0_38, %c0_39] : memref<2x8x128xf32, #tpu.memory_space<vmem>>, vector<2x8x128xf32>
    tpu.vector_store %arg12[%c0_37, %c0_38, %c0_39], %76 {strides = array<i32>} : memref<2x8x128xf32, #tpu.memory_space<vmem>>, vector<2x8x128xf32>,
    return
  }
  func.func @transform_0(%arg0: i32) -> (i32, i32, i32) {
    %c0_i32 = arith.constant 0 : i32
    %c0_i32_0 = arith.constant 0 : i32
    %c0_i32_1 = arith.constant 0 : i32
    return %arg0, %c0_i32, %c0_i32_0 : i32, i32, i32
  }
  func.func @transform_1(%arg0: i32) -> (i32, i32, i32) {
    %c0_i32 = arith.constant 0 : i32
    %c0_i32_0 = arith.constant 0 : i32
    %c0_i32_1 = arith.constant 0 : i32
    return %arg0, %c0_i32, %c0_i32_0 : i32, i32, i32
  }
  func.func @transform_2(%arg0: i32) -> (i32, i32, i32) {
    %c0_i32 = arith.constant 0 : i32
    %c0_i32_0 = arith.constant 0 : i32
    %c0_i32_1 = arith.constant 0 : i32
    return %arg0, %c0_i32, %c0_i32_0 : i32, i32, i32
  }
  func.func @transform_3(%arg0: i32) -> (i32, i32) {
    %c0_i32 = arith.constant 0 : i32
    %c0_i32_0 = arith.constant 0 : i32
    %c0_i32_1 = arith.constant 0 : i32
    return %c0_i32, %c0_i32_0 : i32, i32
  }
  func.func @transform_4(%arg0: i32) -> (i32, i32) {
    %c0_i32 = arith.constant 0 : i32
    %c0_i32_0 = arith.constant 0 : i32
    %c0_i32_1 = arith.constant 0 : i32
    return %c0_i32, %c0_i32_0 : i32, i32
  }
  func.func @transform_5(%arg0: i32) -> (i32, i32) {
    %c0_i32 = arith.constant 0 : i32
    %c0_i32_0 = arith.constant 0 : i32
    %c0_i32_1 = arith.constant 0 : i32
    return %c0_i32, %c0_i32_0 : i32, i32
  }
  func.func @transform_6(%arg0: i32) -> (i32, i32) {
    %c0_i32 = arith.constant 0 : i32
    %c0_i32_0 = arith.constant 0 : i32
    %c0_i32_1 = arith.constant 0 : i32
    return %c0_i32, %c0_i32_0 : i32, i32
  }
  func.func @transform_7(%arg0: i32) -> (i32, i32) {
    %c0_i32 = arith.constant 0 : i32
    %c0_i32_0 = arith.constant 0 : i32
    %c0_i32_1 = arith.constant 0 : i32
    return %c0_i32, %c0_i32_0 : i32, i32
  }
  func.func @transform_8(%arg0: i32) -> (i32, i32) {
    %c0_i32 = arith.constant 0 : i32
    %c0_i32_0 = arith.constant 0 : i32
    %c0_i32_1 = arith.constant 0 : i32
    return %c0_i32, %c0_i32_0 : i32, i32
  }
  func.func @transform_9(%arg0: i32) -> (i32, i32) {
    %c0_i32 = arith.constant 0 : i32
    %c0_i32_0 = arith.constant 0 : i32
    %c0_i32_1 = arith.constant 0 : i32
    return %c0_i32, %c0_i32_0 : i32, i32
  }
  func.func @transform_10(%arg0: i32) -> (i32, i32) {
    %c0_i32 = arith.constant 0 : i32
    %c0_i32_0 = arith.constant 0 : i32
    %c0_i32_1 = arith.constant 0 : i32
    return %c0_i32, %c0_i32_0 : i32, i32
  }
  func.func @transform_11(%arg0: i32) -> (i32, i32, i32) {
    %c0_i32 = arith.constant 0 : i32
    %c0_i32_0 = arith.constant 0 : i32
    %c0_i32_1 = arith.constant 0 : i32
    return %arg0, %c0_i32, %c0_i32_0 : i32, i32, i32
  }
}

</mosaic_0001>

<llo_original>
// kernel: tpu_custom_call.1
$region0: #{tpu_custom_call.1}
  #allocation0 [shape = 'u32[]', space=smem, size = 0x4, offset = 0x4, fixed_abs, tag = 'smem constant byte address 0x4 - core index']
  #allocation1 [shape = 'u32[72,128]{1,0:T(1,128)}', space=vmem, size = 0x9000, scoped, tag = 'internal scratch']
  %s0 = inlined_call_operand.hbm [shape: f32[2,8,32], index: 0, kind: input, shape index: {}]
  %s1 = inlined_call_operand.hbm [shape: f32[2,16,32], index: 1, kind: input, shape index: {}]
  %s2 = inlined_call_operand.hbm [shape: f32[2,1,16], index: 2, kind: input, shape index: {}]
  %s3 = inlined_call_operand.hbm [shape: bf16[32,32], index: 3, kind: input, shape index: {}]
  %s4 = inlined_call_operand.vmem [shape: f32[1,32], index: 4, kind: input, shape index: {}]
  %s5 = inlined_call_operand.hbm [shape: bf16[32,32], index: 5, kind: input, shape index: {}]
  %s6 = inlined_call_operand.vmem [shape: f32[1,32], index: 6, kind: input, shape index: {}]
  %s7 = inlined_call_operand.hbm [shape: bf16[32,32], index: 7, kind: input, shape index: {}]
  %s8 = inlined_call_operand.vmem [shape: f32[1,32], index: 8, kind: input, shape index: {}]
  %s9 = inlined_call_operand.hbm [shape: bf16[32,128], index: 9, kind: input, shape index: {}]
  %s10 = inlined_call_operand.vmem [shape: f32[1,128], index: 10, kind: input, shape index: {}]
  %s11 = inlined_call_operand.hbm [shape: f32[2,8,128], index: 11, kind: output, shape index: {}]
  %s12 = sld [smem:[#allocation0]]
  $region82: #{tpu_custom_call.1} parent=0
    _
  %s14 = ssub.s32 1, %s12
  %s15 = scalar_select 0, %s14, %s12
  $region1: #{tpu_custom_call.1} parent=0
    #allocation2 [shape = 'u8[8192]{0}', space=vmem, size = 0x2000, scoped, tag = 'input window, operand 0, single buffered']
    #allocation3 [shape = 's32[1]{0}', space=sflag, size = 0x4, scoped, tag = 'scoped memory for tpu_custom_call.1']
    #allocation4 [shape = 's32[1]{0}', space=sflag, size = 0x4, scoped, tag = 'scoped memory for tpu_custom_call.1']
    #allocation5 [shape = 'u8[16384]{0}', space=vmem, size = 0x4000, scoped, tag = 'input window, operand 1, single buffered']
    #allocation6 [shape = 's32[1]{0}', space=sflag, size = 0x4, scoped, tag = 'scoped memory for tpu_custom_call.1']
    #allocation7 [shape = 'u8[1024]{0}', space=vmem, size = 0x400, scoped, tag = 'input window, operand 2, single buffered']
    #allocation8 [shape = 'u8[8192]{0}', space=vmem, size = 0x2000, scoped, tag = 'input window, operand 3, single buffered']
    #allocation9 [shape = 's32[1]{0}', space=sflag, size = 0x4, scoped, tag = 'scoped memory for tpu_custom_call.1']
    #allocation10 [shape = 'u8[8192]{0}', space=vmem, size = 0x2000, scoped, tag = 'input window, operand 5, single buffered']
    #allocation11 [shape = 'u8[8192]{0}', space=vmem, size = 0x2000, scoped, tag = 'input window, operand 7, single buffered']
    #allocation12 [shape = 's32[1]{0}', space=sflag, size = 0x4, scoped, tag = 'scoped memory for tpu_custom_call.1']
    #allocation13 [shape = 'u8[8192]{0}', space=vmem, size = 0x2000, scoped, tag = 'input window, operand 9, single buffered']
    #allocation14 [shape = 'u8[8192]{0}', space=vmem, size = 0x2000, scoped, tag = 'output window, operand 0, single buffered']
    %16 = vsyncpa [#allocation3], 0
    %17 = vsyncpa [#allocation6], 0
    %18 = vsyncpa [#allocation9], 0
    %19 = vsyncpa [#allocation12], 0
    %20 = vsyncpa [#allocation4], 0
    // Predicated region
    $region2: #{tpu_custom_call.1} parent=1 // pred_check
      _
    $region3: #{tpu_custom_call.1} parent=1 // pred_check_branch
      %22 = sbr.rel (0) target = $region5
    $region4: #{tpu_custom_call.1} parent=1 // pred_region
      %24 = vsyncadd [#allocation3], 0
      %s25 = sshll.u32 %s0, 4
      %s26 = int_to_ptr.hbm [resolvable:$true] %s25
      %s27 = sshll.u32 [#allocation2], 4
      %s28 = int_to_ptr.vmem [resolvable:$true] %s27
      %33 = dma.hbm_to_vmem [thread:$0]  %s26, 256, %s28, [#allocation3], 128, 128, 8
    $region5: #{tpu_custom_call.1} parent=1 // pred_fallthru
      _
    // Predicated region
    $region6: #{tpu_custom_call.1} parent=1 // pred_check
      _
    $region7: #{tpu_custom_call.1} parent=1 // pred_check_branch
      %35 = sbr.rel (0) target = $region9
    $region8: #{tpu_custom_call.1} parent=1 // pred_region
      %37 = vsyncadd [#allocation6], 0
      %s38 = sshll.u32 %s1, 4
      %s39 = int_to_ptr.hbm [resolvable:$true] %s38
      %s40 = sshll.u32 [#allocation5], 4
      %s41 = int_to_ptr.vmem [resolvable:$true] %s40
      %46 = dma.hbm_to_vmem [thread:$0]  %s39, 512, %s41, [#allocation6], 128, 128, 8
    $region9: #{tpu_custom_call.1} parent=1 // pred_fallthru
      _
    // Predicated region
    $region10: #{tpu_custom_call.1} parent=1 // pred_check
      _
    $region11: #{tpu_custom_call.1} parent=1 // pred_check_branch
      %48 = sbr.rel (0) target = $region13
    $region12: #{tpu_custom_call.1} parent=1 // pred_region
      %50 = vsyncadd [#allocation6], 0
      %s51 = sshll.u32 %s2, 4
      %s52 = int_to_ptr.hbm [resolvable:$true] %s51
      %s53 = sshll.u32 [#allocation7], 4
      %s54 = int_to_ptr.vmem [resolvable:$true] %s53
      %59 = dma.hbm_to_vmem [thread:$0]  %s52, 32, %s54, [#allocation6], 16, 16, 1
    $region13: #{tpu_custom_call.1} parent=1 // pred_fallthru
      _
    // Predicated region
    $region14: #{tpu_custom_call.1} parent=1 // pred_check
      _
    $region15: #{tpu_custom_call.1} parent=1 // pred_check_branch
      %61 = sbr.rel (0) target = $region17
    $region16: #{tpu_custom_call.1} parent=1 // pred_region
      %63 = vsyncadd [#allocation9], 0
      %s64 = sshll.u32 %s3, 4
      %s65 = int_to_ptr.hbm [resolvable:$true] %s64
      %s66 = sshll.u32 [#allocation8], 4
      %s67 = int_to_ptr.vmem [resolvable:$true] %s66
      %72 = dma.hbm_to_vmem [thread:$0]  %s65, 256, %s67, [#allocation9], 64, 64, 4
    $region17: #{tpu_custom_call.1} parent=1 // pred_fallthru
      _
    // Predicated region
    $region18: #{tpu_custom_call.1} parent=1 // pred_check
      _
    $region19: #{tpu_custom_call.1} parent=1 // pred_check_branch
      %74 = sbr.rel (0) target = $region21
    $region20: #{tpu_custom_call.1} parent=1 // pred_region
      _
    $region21: #{tpu_custom_call.1} parent=1 // pred_fallthru
      _
    // Predicated region
    $region22: #{tpu_custom_call.1} parent=1 // pred_check
      _
    $region23: #{tpu_custom_call.1} parent=1 // pred_check_branch
      %76 = sbr.rel (0) target = $region25
    $region24: #{tpu_custom_call.1} parent=1 // pred_region
      %78 = vsyncadd [#allocation9], 0
      %s79 = sshll.u32 %s5, 4
      %s80 = int_to_ptr.hbm [resolvable:$true] %s79
      %s81 = sshll.u32 [#allocation10], 4
      %s82 = int_to_ptr.vmem [resolvable:$true] %s81
      %87 = dma.hbm_to_vmem [thread:$0]  %s80, 256, %s82, [#allocation9], 64, 64, 4
    $region25: #{tpu_custom_call.1} parent=1 // pred_fallthru
      _
    // Predicated region
    $region26: #{tpu_custom_call.1} parent=1 // pred_check
      _
    $region27: #{tpu_custom_call.1} parent=1 // pred_check_branch
      %89 = sbr.rel (0) target = $region29
    $region28: #{tpu_custom_call.1} parent=1 // pred_region
      _
    $region29: #{tpu_custom_call.1} parent=1 // pred_fallthru
      _
    // Predicated region
    $region30: #{tpu_custom_call.1} parent=1 // pred_check
      _
    $region31: #{tpu_custom_call.1} parent=1 // pred_check_branch
      %91 = sbr.rel (0) target = $region33
    $region32: #{tpu_custom_call.1} parent=1 // pred_region
      %93 = vsyncadd [#allocation12], 0
      %s94 = sshll.u32 %s7, 4
      %s95 = int_to_ptr.hbm [resolvable:$true] %s94
      %s96 = sshll.u32 [#allocation11], 4
      %s97 = int_to_ptr.vmem [resolvable:$true] %s96
      %102 = dma.hbm_to_vmem [thread:$0]  %s95, 256, %s97, [#allocation12], 64, 64, 4
    $region33: #{tpu_custom_call.1} parent=1 // pred_fallthru
      _
    // Predicated region
    $region34: #{tpu_custom_call.1} parent=1 // pred_check
      _
    $region35: #{tpu_custom_call.1} parent=1 // pred_check_branch
      %104 = sbr.rel (0) target = $region37
    $region36: #{tpu_custom_call.1} parent=1 // pred_region
      _
    $region37: #{tpu_custom_call.1} parent=1 // pred_fallthru
      _
    // Predicated region
    $region38: #{tpu_custom_call.1} parent=1 // pred_check
      _
    $region39: #{tpu_custom_call.1} parent=1 // pred_check_branch
      %106 = sbr.rel (0) target = $region41
    $region40: #{tpu_custom_call.1} parent=1 // pred_region
      %108 = vsyncadd [#allocation12], 0
      %s109 = sshll.u32 %s9, 4
      %s110 = int_to_ptr.hbm [resolvable:$true] %s109
      %s111 = sshll.u32 [#allocation13], 4
      %s112 = int_to_ptr.vmem [resolvable:$true] %s111
      %117 = dma.hbm_to_vmem [thread:$0]  %s110, 256, %s112, [#allocation12], 64, 64, 4
    $region41: #{tpu_custom_call.1} parent=1 // pred_fallthru
      _
    // Predicated region
    $region42: #{tpu_custom_call.1} parent=1 // pred_check
      _
    $region43: #{tpu_custom_call.1} parent=1 // pred_check_branch
      %119 = sbr.rel (0) target = $region45
    $region44: #{tpu_custom_call.1} parent=1 // pred_region
      _
    $region45: #{tpu_custom_call.1} parent=1 // pred_fallthru
      _
    // Predicated region
    $region46: #{tpu_custom_call.1} parent=1 // pred_check
      _
    $region47: #{tpu_custom_call.1} parent=1 // pred_check_branch
      %121 = sbr.rel (0) target = $region49
    $region48: #{tpu_custom_call.1} parent=1 // pred_region
      %123 = dma.done [#allocation3], 256
    $region49: #{tpu_custom_call.1} parent=1 // pred_fallthru
      _
    // Predicated region
    $region50: #{tpu_custom_call.1} parent=1 // pred_check
      _
    $region51: #{tpu_custom_call.1} parent=1 // pred_check_branch
      %125 = sbr.rel (0) target = $region53
    $region52: #{tpu_custom_call.1} parent=1 // pred_region
      %127 = dma.done [#allocation6], 512
    $region53: #{tpu_custom_call.1} parent=1 // pred_fallthru
      _
    // Predicated region
    $region54: #{tpu_custom_call.1} parent=1 // pred_check
      _
    $region55: #{tpu_custom_call.1} parent=1 // pred_check_branch
      %129 = sbr.rel (0) target = $region57
    $region56: #{tpu_custom_call.1} parent=1 // pred_region
      %131 = dma.done [#allocation6], 32
    $region57: #{tpu_custom_call.1} parent=1 // pred_fallthru
      _
    // Predicated region
    $region58: #{tpu_custom_call.1} parent=1 // pred_check
      _
    $region59: #{tpu_custom_call.1} parent=1 // pred_check_branch
      %133 = sbr.rel (0) target = $region61
    $region60: #{tpu_custom_call.1} parent=1 // pred_region
      %135 = dma.done [#allocation9], 256
    $region61: #{tpu_custom_call.1} parent=1 // pred_fallthru
      _
    // Predicated region
    $region62: #{tpu_custom_call.1} parent=1 // pred_check
      _
    $region63: #{tpu_custom_call.1} parent=1 // pred_check_branch
      %137 = sbr.rel (0) target = $region65
    $region64: #{tpu_custom_call.1} parent=1 // pred_region
      %139 = dma.done [#allocation9], 256
    $region65: #{tpu_custom_call.1} parent=1 // pred_fallthru
      _
    // Predicated region
    $region66: #{tpu_custom_call.1} parent=1 // pred_check
      _
    $region67: #{tpu_custom_call.1} parent=1 // pred_check_branch
      %141 = sbr.rel (0) target = $region69
    $region68: #{tpu_custom_call.1} parent=1 // pred_region
      %143 = dma.done [#allocation12], 256
    $region69: #{tpu_custom_call.1} parent=1 // pred_fallthru
      _
    // Predicated region
    $region70: #{tpu_custom_call.1} parent=1 // pred_check
      _
    $region71: #{tpu_custom_call.1} parent=1 // pred_check_branch
      %145 = sbr.rel (0) target = $region73
    $region72: #{tpu_custom_call.1} parent=1 // pred_region
      %147 = dma.done [#allocation12], 256
    $region73: #{tpu_custom_call.1} parent=1 // pred_fallthru
      _
    %v149 = vld [vmem:[#allocation2] sm:$0xff]
    %v150 = vld [vmem:[#allocation2 + $0x8] sm:$0xff]
    %v151 = vpack.c.bf16 %v150, %v149
    %v152 = vld [vmem:[#allocation5] sm:$0xff]
    %v153 = vld [vmem:[#allocation5 + $0x8] sm:$0xff]
    %v154 = vld [vmem:[#allocation5 + $0x10] sm:$0xff]
    %v155 = vld [vmem:[#allocation5 + $0x18] sm:$0xff]
    %v156 = vpack.c.bf16 %v153, %v152
    %v157 = vpack.c.bf16 %v155, %v154
    %v158 = vld [vmem:[#allocation8] sm:$0xf]
    %v159 = vld [vmem:[#allocation8 + $0x4] sm:$0xf]
    %v160 = vld [vmem:[#allocation8 + $0x8] sm:$0xf]
    %v161 = vld [vmem:[#allocation8 + $0xc] sm:$0xf]
    %v162 = vld [vmem:[%s4] sm:$0x1]
    %v164 = vperm.slane %v162, 0
    %v170 = vunpack.c.l.b16 %v158
    %v171 = vunpack.c.l.b16 %v159
    %v172 = vunpack.c.l.b16 %v160
    %v173 = vunpack.c.l.b16 %v161
    %v174 = vpack.c.b16 %v171, %v170
    %v175 = vpack.c.b16 %v173, %v172
    %vm178 = vcmask 261120
    %v180 = vsel %vm178, %v151, 0
    %182 = vmatpush.bf16.msra.mxu0 0
    %183 = vmatpush.bf16.msra.mxu0 0
    %184 = vmatpush.bf16.msra.mxu0 0
    %185 = vmatpush.bf16.msra.mxu0 0
    %186 = vmatpush.bf16.msra.mxu0 0
    %187 = vmatpush.bf16.msra.mxu0 0
    %188 = vmatpush.bf16.msra.mxu0 %v175
    %189 = vmatpush.bf16.msra.mxu0 %v174
    %190 = vmatmul.bf16.gmra.mxu0 %v180
    %v191 = vpop.f32.mrf.mxu0
    %v192 = vadd.f32 %v164, %v191
    %v193 = vpop.f32.mrf.mxu0
    %v194 = vadd.f32 %v164, %v193
    %195 = vdwg.mxu0
    %v196 = vld [vmem:[#allocation10] sm:$0xf]
    %v197 = vld [vmem:[#allocation10 + $0x4] sm:$0xf]
    %v198 = vld [vmem:[#allocation10 + $0x8] sm:$0xf]
    %v199 = vld [vmem:[#allocation10 + $0xc] sm:$0xf]
    %v200 = vld [vmem:[%s6] sm:$0x1]
    %v202 = vperm.slane %v200, 0
    %v208 = vunpack.c.l.b16 %v196
    %v209 = vunpack.c.l.b16 %v197
    %v210 = vunpack.c.l.b16 %v198
    %v211 = vunpack.c.l.b16 %v199
    %v212 = vpack.c.b16 %v209, %v208
    %v213 = vpack.c.b16 %v211, %v210
    %v217 = vsel %vm178, %v156, 0
    %v220 = vsel %vm178, %v157, 0
    %222 = vmatpush.bf16.msra.mxu0 0
    %223 = vmatpush.bf16.msra.mxu0 0
    %224 = vmatpush.bf16.msra.mxu0 0
    %225 = vmatpush.bf16.msra.mxu0 0
    %226 = vmatpush.bf16.msra.mxu0 0
    %227 = vmatpush.bf16.msra.mxu0 0
    %228 = vmatpush.bf16.msra.mxu0 %v213
    %229 = vmatpush.bf16.msra.mxu0 %v212
    %230 = vmatmul.bf16.gmra.mxu0 %v217
    %v231 = vpop.f32.mrf.mxu0
    %v232 = vadd.f32 %v202, %v231
    %v233 = vpop.f32.mrf.mxu0
    %v234 = vadd.f32 %v202, %v233
    %235 = vmatmul.bf16.gmra.mxu0 %v220
    %v236 = vpop.f32.mrf.mxu0
    %v237 = vadd.f32 %v202, %v236
    %v238 = vpop.f32.mrf.mxu0
    %v239 = vadd.f32 %v202, %v238
    %240 = vdwg.mxu0
    %v241 = vld [vmem:[#allocation11] sm:$0xf]
    %v242 = vld [vmem:[#allocation11 + $0x4] sm:$0xf]
    %v243 = vld [vmem:[#allocation11 + $0x8] sm:$0xf]
    %v244 = vld [vmem:[#allocation11 + $0xc] sm:$0xf]
    %v245 = vld [vmem:[%s8] sm:$0x1]
    %v247 = vperm.slane %v245, 0
    %v253 = vunpack.c.l.b16 %v241
    %v254 = vunpack.c.l.b16 %v242
    %v255 = vunpack.c.l.b16 %v243
    %v256 = vunpack.c.l.b16 %v244
    %v257 = vpack.c.b16 %v254, %v253
    %v258 = vpack.c.b16 %v256, %v255
    %261 = vmatpush.bf16.msra.mxu0 0
    %262 = vmatpush.bf16.msra.mxu0 0
    %263 = vmatpush.bf16.msra.mxu0 0
    %264 = vmatpush.bf16.msra.mxu0 0
    %265 = vmatpush.bf16.msra.mxu0 0
    %266 = vmatpush.bf16.msra.mxu0 0
    %267 = vmatpush.bf16.msra.mxu0 %v258
    %268 = vmatpush.bf16.msra.mxu0 %v257
    %269 = vmatmul.bf16.gmra.mxu0 %v217
    %v270 = vpop.f32.mrf.mxu0
    %v271 = vadd.f32 %v247, %v270
    %v272 = vpop.f32.mrf.mxu0
    %v273 = vadd.f32 %v247, %v272
    %274 = vmatmul.bf16.gmra.mxu0 %v220
    %v275 = vpop.f32.mrf.mxu0
    %v276 = vadd.f32 %v247, %v275
    %v277 = vpop.f32.mrf.mxu0
    %v278 = vadd.f32 %v247, %v277
    %279 = vdwg.mxu0
    %v280 = vpack.c.bf16 %v192, %v192
    %v281 = vpack.c.bf16 %v194, %v194
    %v282 = vpack.c.bf16 %v232, %v232
    %v283 = vpack.c.bf16 %v234, %v234
    %v284 = vpack.c.bf16 %v237, %v237
    %v285 = vpack.c.bf16 %v239, %v239
    %v286 = vpack.c.bf16 %v271, %v271
    %v287 = vpack.c.bf16 %v273, %v273
    %v288 = vpack.c.bf16 %v276, %v276
    %v289 = vpack.c.bf16 %v278, %v278
    %v290 = vld [vmem:[#allocation7] sm:$0x1]
    %v291 = vld [vmem:[#allocation7 + $0x1] sm:$0x1]
    %v292 = vsub.f32 %v290, 1.0
    %v293 = vsub.f32 %v291, 1.0
    %v294 = vmul.f32 %v292, 1e+10
    %v295 = vmul.f32 %v293, 1e+10
    %v298 = vperm.slane %v294, 0
    %v299 = vperm.slane %v295, 0
    %v304 = vunpack.c.l.b16 %v282
    %v305 = vunpack.c.l.b16 %v283
    %v306 = vpack.c.b16 %v305, %v304
    %vm307 = vcmask 130048
    %v309 = vsel %vm307, %v280, 0
    %v312 = vsel %vm307, %v306, 0
    %314 = vmatpush.bf16.xpose.msra.mxu0 0
    %315 = vmatpush.bf16.xpose.msra.mxu0 0
    %316 = vmatpush.bf16.xpose.msra.mxu0 0
    %317 = vmatpush.bf16.xpose.msra.mxu0 0
    %318 = vmatpush.bf16.xpose.msra.mxu0 0
    %319 = vmatpush.bf16.xpose.msra.mxu0 0
    %320 = vmatpush.bf16.xpose.msra.mxu0 0
    %321 = vmatpush.bf16.xpose.msra.mxu0 %v312
    %322 = vmatmul.bf16.gmra.mxu0 %v309
    %v323 = vpop.f32.mrf.mxu0
    %v324 = vadd.f32 %v298, %v323
    %v325 = vpop.f32.mrf.mxu0
    %326 = vdwg.mxu0
    %v329 = vunpack.c.l.b16 %v284
    %v330 = vunpack.c.l.b16 %v285
    %v331 = vpack.c.b16 %v330, %v329
    %v333 = vsel %vm307, %v281, 0
    %v336 = vsel %vm307, %v331, 0
    %338 = vmatpush.bf16.xpose.msra.mxu0 0
    %339 = vmatpush.bf16.xpose.msra.mxu0 0
    %340 = vmatpush.bf16.xpose.msra.mxu0 0
    %341 = vmatpush.bf16.xpose.msra.mxu0 0
    %342 = vmatpush.bf16.xpose.msra.mxu0 0
    %343 = vmatpush.bf16.xpose.msra.mxu0 0
    %344 = vmatpush.bf16.xpose.msra.mxu0 0
    %345 = vmatpush.bf16.xpose.msra.mxu0 %v336
    %346 = vmatmul.bf16.gmra.mxu0 %v333
    %v347 = vpop.f32.mrf.mxu0
    %v348 = vadd.f32 %v299, %v347
    %v349 = vpop.f32.mrf.mxu0
    %350 = vdwg.mxu0
    %v351 = vsel %vm307, %v324, -inf
    %352 = vmax.xlane.f32.xlu0 %v351
    %v353 = vpop.xlane.xlu0 %352
    %v354 = vsel %vm307, %v348, -inf
    %355 = vmax.xlane.f32.xlu0 %v354
    %v356 = vpop.xlane.xlu0 %355
    %v357 = vsub.f32 %v324, %v353
    %v358 = vsub.f32 %v348, %v356
    %v359 = vmul.f32 %v357, 1.442695
    %v360 = vpow.pop %v359
    %v361 = vmul.f32 %v358, 1.442695
    %v362 = vpow.pop %v361
    %v363 = vsel %vm307, %v360, 0.0
    %364 = vadd.xlane.f32.xlu0 %v363
    %v365 = vpop.xlane.xlu0 %364
    %v366 = vsel %vm307, %v362, 0.0
    %367 = vadd.xlane.f32.xlu0 %v366
    %v368 = vpop.xlane.xlu0 %367
    %v369 = vrcp.pop %v365
    %v370 = vrcp.pop %v368
    %v371 = vmul.f32 %v360, %v369
    %v372 = vmul.f32 %v362, %v370
    %v373 = vpack.c.bf16 %v371, %v371
    %v374 = vpack.c.bf16 %v372, %v372
    %v377 = vunpack.c.l.b16 %v286
    %v378 = vunpack.c.l.b16 %v287
    %v379 = vpack.c.b16 %v378, %v377
    %v382 = vsel %vm307, %v373, 0
    %384 = vmatpush.bf16.msra.mxu0 0
    %385 = vmatpush.bf16.msra.mxu0 0
    %386 = vmatpush.bf16.msra.mxu0 0
    %387 = vmatpush.bf16.msra.mxu0 0
    %388 = vmatpush.bf16.msra.mxu0 0
    %389 = vmatpush.bf16.msra.mxu0 0
    %390 = vmatpush.bf16.msra.mxu0 0
    %391 = vmatpush.bf16.msra.mxu0 %v379
    %392 = vmatmul.bf16.gmra.mxu0 %v382
    %v393 = vpop.f32.mrf.mxu0
    %v394 = vadd.f32 0.0, %v393
    %v395 = vpop.f32.mrf.mxu0
    %396 = vdwg.mxu0
    %v399 = vunpack.c.l.b16 %v288
    %v400 = vunpack.c.l.b16 %v289
    %v401 = vpack.c.b16 %v400, %v399
    %v404 = vsel %vm307, %v374, 0
    %406 = vmatpush.bf16.msra.mxu0 0
    %407 = vmatpush.bf16.msra.mxu0 0
    %408 = vmatpush.bf16.msra.mxu0 0
    %409 = vmatpush.bf16.msra.mxu0 0
    %410 = vmatpush.bf16.msra.mxu0 0
    %411 = vmatpush.bf16.msra.mxu0 0
    %412 = vmatpush.bf16.msra.mxu0 0
    %413 = vmatpush.bf16.msra.mxu0 %v401
    %414 = vmatmul.bf16.gmra.mxu0 %v404
    %v415 = vpop.f32.mrf.mxu0
    %v416 = vadd.f32 0.0, %v415
    %v417 = vpop.f32.mrf.mxu0
    %418 = vdwg.mxu0
    %v420 = vunpack.c.l.b16 %v280
    %v421 = vpack.c.b16 %v420, %v420
    %422 = vrot.lane.b32.xlu0 %v421, 112
    %v423 = vpop.permute.xlu0 %422
    %424 = vrot.lane.b32.xlu0 %v306, 112
    %v425 = vpop.permute.xlu0 %424
    %v427 = vsel %vm307, %v423, 0
    %v430 = vsel %vm307, %v425, 0
    %432 = vmatpush.bf16.xpose.msra.mxu0 0
    %433 = vmatpush.bf16.xpose.msra.mxu0 0
    %434 = vmatpush.bf16.xpose.msra.mxu0 0
    %435 = vmatpush.bf16.xpose.msra.mxu0 0
    %436 = vmatpush.bf16.xpose.msra.mxu0 0
    %437 = vmatpush.bf16.xpose.msra.mxu0 0
    %438 = vmatpush.bf16.xpose.msra.mxu0 0
    %439 = vmatpush.bf16.xpose.msra.mxu0 %v430
    %440 = vmatmul.bf16.gmra.mxu0 %v427
    %v441 = vpop.f32.mrf.mxu0
    %v442 = vadd.f32 %v298, %v441
    %v443 = vpop.f32.mrf.mxu0
    %444 = vdwg.mxu0
    %v446 = vunpack.c.l.b16 %v281
    %v447 = vpack.c.b16 %v446, %v446
    %448 = vrot.lane.b32.xlu0 %v447, 112
    %v449 = vpop.permute.xlu0 %448
    %450 = vrot.lane.b32.xlu0 %v331, 112
    %v451 = vpop.permute.xlu0 %450
    %v453 = vsel %vm307, %v449, 0
    %v456 = vsel %vm307, %v451, 0
    %458 = vmatpush.bf16.xpose.msra.mxu0 0
    %459 = vmatpush.bf16.xpose.msra.mxu0 0
    %460 = vmatpush.bf16.xpose.msra.mxu0 0
    %461 = vmatpush.bf16.xpose.msra.mxu0 0
    %462 = vmatpush.bf16.xpose.msra.mxu0 0
    %463 = vmatpush.bf16.xpose.msra.mxu0 0
    %464 = vmatpush.bf16.xpose.msra.mxu0 0
    %465 = vmatpush.bf16.xpose.msra.mxu0 %v456
    %466 = vmatmul.bf16.gmra.mxu0 %v453
    %v467 = vpop.f32.mrf.mxu0
    %v468 = vadd.f32 %v299, %v467
    %v469 = vpop.f32.mrf.mxu0
    %470 = vdwg.mxu0
    %v471 = vsel %vm307, %v442, -inf
    %472 = vmax.xlane.f32.xlu0 %v471
    %v473 = vpop.xlane.xlu0 %472
    %v474 = vsel %vm307, %v468, -inf
    %475 = vmax.xlane.f32.xlu0 %v474
    %v476 = vpop.xlane.xlu0 %475
    %v477 = vsub.f32 %v442, %v473
    %v478 = vsub.f32 %v468, %v476
    %v479 = vmul.f32 %v477, 1.442695
    %v480 = vpow.pop %v479
    %v481 = vmul.f32 %v478, 1.442695
    %v482 = vpow.pop %v481
    %v483 = vsel %vm307, %v480, 0.0
    %484 = vadd.xlane.f32.xlu0 %v483
    %v485 = vpop.xlane.xlu0 %484
    %v486 = vsel %vm307, %v482, 0.0
    %487 = vadd.xlane.f32.xlu0 %v486
    %v488 = vpop.xlane.xlu0 %487
    %v489 = vrcp.pop %v485
    %v490 = vrcp.pop %v488
    %v491 = vmul.f32 %v480, %v489
    %v492 = vmul.f32 %v482, %v490
    %v493 = vpack.c.bf16 %v491, %v491
    %v494 = vpack.c.bf16 %v492, %v492
    %495 = vrot.lane.b32.xlu0 %v379, 112
    %v496 = vpop.permute.xlu0 %495
    %v499 = vsel %vm307, %v493, 0
    %501 = vmatpush.bf16.msra.mxu0 0
    %502 = vmatpush.bf16.msra.mxu0 0
    %503 = vmatpush.bf16.msra.mxu0 0
    %504 = vmatpush.bf16.msra.mxu0 0
    %505 = vmatpush.bf16.msra.mxu0 0
    %506 = vmatpush.bf16.msra.mxu0 0
    %507 = vmatpush.bf16.msra.mxu0 0
    %508 = vmatpush.bf16.msra.mxu0 %v496
    %509 = vmatmul.bf16.gmra.mxu0 %v499
    %v510 = vpop.f32.mrf.mxu0
    %v511 = vadd.f32 0.0, %v510
    %v512 = vpop.f32.mrf.mxu0
    %513 = vdwg.mxu0
    %514 = vrot.lane.b32.xlu0 %v401, 112
    %v515 = vpop.permute.xlu0 %514
    %v518 = vsel %vm307, %v494, 0
    %520 = vmatpush.bf16.msra.mxu0 0
    %521 = vmatpush.bf16.msra.mxu0 0
    %522 = vmatpush.bf16.msra.mxu0 0
    %523 = vmatpush.bf16.msra.mxu0 0
    %524 = vmatpush.bf16.msra.mxu0 0
    %525 = vmatpush.bf16.msra.mxu0 0
    %526 = vmatpush.bf16.msra.mxu0 0
    %527 = vmatpush.bf16.msra.mxu0 %v515
    %528 = vmatmul.bf16.gmra.mxu0 %v518
    %v529 = vpop.f32.mrf.mxu0
    %v530 = vadd.f32 0.0, %v529
    %v531 = vpop.f32.mrf.mxu0
    %532 = vdwg.mxu0
    %535 = vrot.lane.b32.xlu0 %v511, 16
    %v536 = vpop.permute.xlu0 %535
    %537 = vrot.lane.b32.xlu0 %v530, 16
    %v538 = vpop.permute.xlu0 %537
    %v541 = vsel %vm307, %v394, %v536
    %v542 = vsel %vm307, %v416, %v538
    %v543 = vpack.c.bf16 %v542, %v541
    %v544 = vld [vmem:[#allocation13] sm:$0xf]
    %v545 = vld [vmem:[#allocation13 + $0x4] sm:$0xf]
    %v546 = vld [vmem:[#allocation13 + $0x8] sm:$0xf]
    %v547 = vld [vmem:[#allocation13 + $0xc] sm:$0xf]
    %v548 = vld [vmem:[%s10] sm:$0x1]
    %v550 = vperm.slane %v548, 0
    %v556 = vunpack.c.l.b16 %v544
    %v557 = vunpack.c.l.b16 %v545
    %v558 = vunpack.c.l.b16 %v546
    %v559 = vunpack.c.l.b16 %v547
    %v560 = vpack.c.b16 %v557, %v556
    %v561 = vpack.c.b16 %v559, %v558
    %v565 = vsel %vm178, %v543, 0
    %567 = vmatpush.bf16.msra.mxu0 0
    %568 = vmatpush.bf16.msra.mxu0 0
    %569 = vmatpush.bf16.msra.mxu0 0
    %570 = vmatpush.bf16.msra.mxu0 0
    %571 = vmatpush.bf16.msra.mxu0 0
    %572 = vmatpush.bf16.msra.mxu0 0
    %573 = vmatpush.bf16.msra.mxu0 %v561
    %574 = vmatpush.bf16.msra.mxu0 %v560
    %575 = vmatmul.bf16.gmra.mxu0 %v565
    %v576 = vpop.f32.mrf.mxu0
    %v577 = vadd.f32 %v550, %v576
    %v578 = vpop.f32.mrf.mxu0
    %v579 = vadd.f32 %v550, %v578
    %580 = vdwg.mxu0
    %581 = vst [vmem:[#allocation14] sm:$0xff] %v577
    %582 = vst [vmem:[#allocation14 + $0x8] sm:$0xff] %v579
    // Predicated region
    $region74: #{tpu_custom_call.1} parent=1 // pred_check
      _
    $region75: #{tpu_custom_call.1} parent=1 // pred_check_branch
      %584 = sbr.rel (0) target = $region77
    $region76: #{tpu_custom_call.1} parent=1 // pred_region
      %586 = vsyncadd [#allocation4], 0
      %s587 = sshll.u32 [#allocation14], 4
      %s588 = int_to_ptr.vmem [resolvable:$true] %s587
      %s589 = sshll.u32 %s11, 4
      %s590 = int_to_ptr.hbm [resolvable:$true] %s589
      %595 = dma.vmem_to_hbm [thread:$0]  %s588, 256, %s590, [#allocation4], 128, 128, 8
    $region77: #{tpu_custom_call.1} parent=1 // pred_fallthru
      _
    // Predicated region
    $region78: #{tpu_custom_call.1} parent=1 // pred_check
      _
    $region79: #{tpu_custom_call.1} parent=1 // pred_check_branch
      %597 = sbr.rel (0) target = $region81
    $region80: #{tpu_custom_call.1} parent=1 // pred_region
      %599 = dma.done [#allocation4], 256
    $region81: #{tpu_custom_call.1} parent=1 // pred_fallthru
      _
    %600 = vsyncpa [#allocation3], 1
    %601 = vsyncpa [#allocation6], 1
    %602 = vsyncpa [#allocation9], 1
    %603 = vsyncpa [#allocation12], 1
    %604 = vsyncpa [#allocation4], 1

</llo_original>
